<compile_context>
chip_gen: v6e
topology: v6e:2x2x1
jax: 0.10.0
libtpu: 0.0.40
codegen_flags: <defaults>
</compile_context>

<pallas_src>
from functools import partial

import jax
import jax.numpy as jnp
from jax import lax
from jax.experimental import pallas as pl
from jax.experimental.pallas import tpu as pltpu


def _readhead_kernel(ctrl_ref, mem_ref, w_ref, b_ref, out_ref):
    ctrl = ctrl_ref[...]       # (TB, C)
    mem = mem_ref[...]         # (TB, N, M)
    w = w_ref[...]             # (C, M+1)  == [wk | wb]
    b = b_ref[...]             # (1, M+1)  == [bk | bb]

    M = mem.shape[2]

    # --- fused Linear: one MXU call instead of two -------------------------
    kb = jnp.dot(ctrl, w, preferred_element_type=jnp.float32) + b   # (TB, M+1)
    key = jnp.tanh(kb[:, :M])                                       # (TB, M)
    beta_lin = kb[:, M:]                                            # (TB, 1)

    # softplus(beta_lin) + 1e-5  (numerically stable form)
    beta = (jnp.maximum(beta_lin, 0.0)
            + jnp.log1p(jnp.exp(-jnp.abs(beta_lin))) + 1e-5)        # (TB, 1)

    # --- cosine similarity without normalizing the full memory tensor ------
    # F.normalize semantics: x / max(||x||, 1e-12)  ==  x * rsqrt(max(||x||^2, 1e-24))
    def _rsqrt(x):
        y = lax.rsqrt(x)                       # EUP slot
        return y * (1.5 - 0.5 * x * y * y)     # one Newton step -> ~f32 exact

    key_inv = _rsqrt(jnp.maximum(
        jnp.sum(key * key, axis=1, keepdims=True), 1e-24))          # (TB, 1)
    norm_key = key * key_inv                                        # (TB, M)

    mem_inv = _rsqrt(jnp.maximum(jnp.sum(mem * mem, axis=2), 1e-24))  # (TB, N)
    dot = jnp.sum(mem * norm_key[:, None, :], axis=2)               # (TB, N)
    sim = dot * mem_inv                                             # (TB, N)

    # --- softmax over slots (EUP reciprocal, Newton-refined) ----------------
    logits = beta * sim
    logits = logits - jnp.max(logits, axis=1, keepdims=True)
    e = jnp.exp(logits)
    s = jnp.sum(e, axis=1, keepdims=True)                           # (TB, 1)
    inv_s = pl.reciprocal(s, approx=True)
    inv_s = inv_s * (2.0 - s * inv_s)                               # Newton step
    wgt = e * inv_s                                                 # (TB, N)

    # --- weighted read of memory -------------------------------------------
    # N=16 here: the sublane-direction VPU reduce is cheaper than a padded
    # MXU call; switch to einsum('bn,bnm->bm') if N grows to >=128 slots.
    read_vec = jnp.sum(wgt[:, :, None] * mem, axis=1)               # (TB, M)

    # Packed, single output buffer (read_vec | weights).
    out_ref[:, :M] = read_vec
    out_ref[:, M:] = wgt


def _batch_tile(B, max_tile=64):
    """Largest multiple-of-8 divisor of B (<= max_tile), else the whole batch."""
    best = None
    t = 8
    while t <= min(B, max_tile):
        if B % t == 0:
            best = t
        t += 8
    return best if best is not None else B


@partial(jax.jit, static_argnames=("batch_tile",))
def read_head(controller_output, memory, wk, bk, wb, bb, *, batch_tile=None):
    """controller_output: (B, C); memory: (B, N, M); returns (read_vec, weights)."""
    B, C = controller_output.shape
    _, N, M = memory.shape

    # Fuse the two Linear layers into one weight/bias (done once, outside kernel).
    w_cat = jnp.concatenate([wk, wb], axis=1)                     # (C, M+1)
    b_cat = jnp.concatenate([bk.reshape(1, M), bb.reshape(1, 1)], axis=1)  # (1, M+1)

    tb = batch_tile if batch_tile is not None else _batch_tile(B)
    assert B % tb == 0, "batch_tile must divide the batch"
    grid = (B // tb,)

    # Per-block VMEM (f32): tb*(C + N*M + 2*(M+N+1)) + (C+1)*(M+1) floats,
    # double-buffered — tiny here; keep well under 64 MiB/TC if N, M scale (v7x).
    out = pl.pallas_call(
        _readhead_kernel,
        out_shape=jax.ShapeDtypeStruct((B, M + N), jnp.float32),
        grid_spec=pltpu.PrefetchScalarGridSpec(
            num_scalar_prefetch=0,
            grid=grid,
            in_specs=[
                pl.BlockSpec((tb, C), lambda i: (i, 0)),
                pl.BlockSpec((tb, N, M), lambda i: (i, 0, 0)),
                pl.BlockSpec((C, M + 1), lambda i: (0, 0)),
                pl.BlockSpec((1, M + 1), lambda i: (0, 0)),
            ],
            out_specs=pl.BlockSpec((tb, M + N), lambda i: (i, 0)),
        ),
        compiler_params=pltpu.CompilerParams(
            dimension_semantics=("parallel",)),   # shard batch blocks across TCs (v7x)
    )(controller_output, memory, w_cat, b_cat)

    return out[:, :M], out[:, M:]


def _reference(controller_output, memory, wk, bk, wb, bb):
    key = jnp.tanh(controller_output @ wk + bk)
    beta = jax.nn.softplus(controller_output @ wb + bb) + 1e-5
    norm_mem = memory / jnp.maximum(
        jnp.linalg.norm(memory, axis=2, keepdims=True), 1e-12)
    norm_key = key / jnp.maximum(
        jnp.linalg.norm(key, axis=1, keepdims=True), 1e-12)
    sim = jnp.einsum('bnm,bm->bn', norm_mem, norm_key)
    weights = jax.nn.softmax(beta * sim, axis=1)
    read_vec = jnp.einsum('bn,bnm->bm', weights, memory)
    return read_vec, weights


if __name__ == "__main__":
    # Small shapes consistent with the module: B=2, controller_output_size=32,
    # memory with N=16 slots of width M=32.
    B, C, N, M = 2, 32, 16, 32
    key0 = jax.random.PRNGKey(0)
    k_ctrl, k_mem, k_wk, k_bk, k_wb, k_bb, k_big = jax.random.split(key0, 7)

    controller_output = jax.random.normal(k_ctrl, (B, C), dtype=jnp.float32)
    memory = jax.random.normal(k_mem, (B, N, M), dtype=jnp.float32)

    # torch Linear params stored pre-transposed as (C, M) / (C, 1).
    wk = 0.1 * jax.random.normal(k_wk, (C, M), dtype=jnp.float32)
    bk = 0.1 * jax.random.normal(k_bk, (1, M), dtype=jnp.float32)
    wb = 0.1 * jax.random.normal(k_wb, (C, 1), dtype=jnp.float32)
    bb = 0.1 * jax.random.normal(k_bb, (1, 1), dtype=jnp.float32)

    read_vec, weights = read_head(controller_output, memory, wk, bk, wb, bb)
    jax.block_until_ready((read_vec, weights))

    ref_read, ref_w = _reference(controller_output, memory, wk, bk, wb, bb)
    assert read_vec.shape == (B, M) and weights.shape == (B, N)
    assert jnp.allclose(read_vec, ref_read, atol=1e-5, rtol=1e-5)
    assert jnp.allclose(weights, ref_w, atol=1e-5, rtol=1e-5)

    # Larger batch: exercises the batch-tiled grid / megacore-parallel path.
    BB = 64
    kc2, km2 = jax.random.split(k_big)
    ctrl2 = jax.random.normal(kc2, (BB, C), dtype=jnp.float32)
    mem2 = jax.random.normal(km2, (BB, N, M), dtype=jnp.float32)
    r2, w2 = read_head(ctrl2, mem2, wk, bk, wb, bb, batch_tile=16)
    jax.block_until_ready((r2, w2))
    rr2, rw2 = _reference(ctrl2, mem2, wk, bk, wb, bb)
    assert jnp.allclose(r2, rr2, atol=1e-5, rtol=1e-5)
    assert jnp.allclose(w2, rw2, atol=1e-5, rtol=1e-5)

    print("KERNEL_OK")
</pallas_src>

<mosaic_0001>
module attributes {stable_mosaic.version = 11 : i64} {
  func.func @_readhead_kernel(%arg0: i32, %arg1: memref<2x32xf32, #tpu.memory_space<vmem>>, %arg2: memref<2x16x32xf32, #tpu.memory_space<vmem>>, %arg3: memref<32x33xf32, #tpu.memory_space<vmem>>, %arg4: memref<1x33xf32, #tpu.memory_space<vmem>>, %arg5: memref<2x48xf32, #tpu.memory_space<vmem>>) attributes {dimension_semantics = [#tpu.dimension_semantics<parallel>], iteration_bounds = array<i64: 1>, scalar_prefetch = 0 : i64, scratch_operands = 0 : i64, tpu.core_type = #tpu.core_type<tc>, window_params = [{transform_indices = @transform_0, window_bounds = array<i64: 2, 32>}, {transform_indices = @transform_1, window_bounds = array<i64: 2, 16, 32>}, {pipeline_mode = #tpu.pipeline_mode<synchronous>, transform_indices = @transform_2, window_bounds = array<i64: 32, 33>}, {pipeline_mode = #tpu.pipeline_mode<synchronous>, transform_indices = @transform_3, window_bounds = array<i64: 1, 33>}, {transform_indices = @transform_4, window_bounds = array<i64: 2, 48>}]} {
    %c0 = arith.constant 0 : index
    %c0_0 = arith.constant 0 : index
    %0 = vector.load %arg1[%c0, %c0_0] : memref<2x32xf32, #tpu.memory_space<vmem>>, vector<2x32xf32>
    %c0_1 = arith.constant 0 : index
    %c0_2 = arith.constant 0 : index
    %c0_3 = arith.constant 0 : index
    %1 = vector.load %arg2[%c0_1, %c0_2, %c0_3] : memref<2x16x32xf32, #tpu.memory_space<vmem>>, vector<2x16x32xf32>
    %c0_4 = arith.constant 0 : index
    %c0_5 = arith.constant 0 : index
    %2 = vector.load %arg3[%c0_4, %c0_5] : memref<32x33xf32, #tpu.memory_space<vmem>>, vector<32x33xf32>
    %c0_6 = arith.constant 0 : index
    %c0_7 = arith.constant 0 : index
    %3 = vector.load %arg4[%c0_6, %c0_7] : memref<1x33xf32, #tpu.memory_space<vmem>>, vector<1x33xf32>
    %cst = arith.constant dense<0.000000e+00> : vector<2x33xf32>
    %4 = tpu.matmul %0, %2, %cst {dimension_numbers = #tpu.dot_dimension_numbers<[1], [0], [0], [1], [0, 0, 1, 1], [], []>} : vector<2x32xf32>, vector<32x33xf32>, vector<2x33xf32> -> vector<2x33xf32>
    %5 = vector.broadcast %3 : vector<1x33xf32> to vector<2x33xf32>
    %6 = arith.addf %4, %5 : vector<2x33xf32>
    %7 = vector.extract_strided_slice %6 {offsets = [0, 0], sizes = [2, 32], strides = [1, 1]} : vector<2x33xf32> to vector<2x32xf32>
    %8 = math.tanh %7 : vector<2x32xf32>
    %9 = vector.extract_strided_slice %6 {offsets = [0, 32], sizes = [2, 1], strides = [1, 1]} : vector<2x33xf32> to vector<2x1xf32>
    %cst_8 = arith.constant 0.000000e+00 : f32
    %10 = vector.broadcast %cst_8 : f32 to vector<2x1xf32>
    %11 = arith.maximumf %9, %10 : vector<2x1xf32>
    %12 = math.absf %9 : vector<2x1xf32>
    %cst_9 = arith.constant 0.000000e+00 : f32
    %13 = vector.broadcast %cst_9 : f32 to vector<2x1xf32>
    %14 = arith.subf %13, %12 : vector<2x1xf32>
    %15 = math.exp %14 : vector<2x1xf32>
    %16 = math.log1p %15 : vector<2x1xf32>
    %17 = arith.addf %11, %16 : vector<2x1xf32>
    %cst_10 = arith.constant 9.99999974E-6 : f32
    %18 = vector.broadcast %cst_10 : f32 to vector<2x1xf32>
    %19 = arith.addf %17, %18 : vector<2x1xf32>
    %20 = arith.mulf %8, %8 : vector<2x32xf32>
    %cst_11 = arith.constant dense<0.000000e+00> : vector<2xf32>
    %21 = vector.multi_reduction <add>, %20, %cst_11 [1] : vector<2x32xf32> to vector<2xf32>
    %22 = vector.shape_cast %21 : vector<2xf32> to vector<2x1xf32>
    %cst_12 = arith.constant 1.000000e-24 : f32
    %23 = vector.broadcast %cst_12 : f32 to vector<2x1xf32>
    %24 = arith.maximumf %22, %23 : vector<2x1xf32>
    %25 = math.rsqrt %24 : vector<2x1xf32>
    %cst_13 = arith.constant 5.000000e-01 : f32
    %26 = vector.broadcast %cst_13 : f32 to vector<2x1xf32>
    %27 = arith.mulf %26, %24 : vector<2x1xf32>
    %28 = arith.mulf %27, %25 : vector<2x1xf32>
    %29 = arith.mulf %28, %25 : vector<2x1xf32>
    %cst_14 = arith.constant 1.500000e+00 : f32
    %30 = vector.broadcast %cst_14 : f32 to vector<2x1xf32>
    %31 = arith.subf %30, %29 : vector<2x1xf32>
    %32 = arith.mulf %25, %31 : vector<2x1xf32>
    %33 = vector.broadcast %32 : vector<2x1xf32> to vector<2x32xf32>
    %34 = arith.mulf %8, %33 : vector<2x32xf32>
    %35 = arith.mulf %1, %1 : vector<2x16x32xf32>
    %cst_15 = arith.constant dense<0.000000e+00> : vector<2x16xf32>
    %36 = vector.multi_reduction <add>, %35, %cst_15 [2] : vector<2x16x32xf32> to vector<2x16xf32>
    %cst_16 = arith.constant 1.000000e-24 : f32
    %37 = vector.broadcast %cst_16 : f32 to vector<2x16xf32>
    %38 = arith.maximumf %36, %37 : vector<2x16xf32>
    %39 = math.rsqrt %38 : vector<2x16xf32>
    %cst_17 = arith.constant 5.000000e-01 : f32
    %40 = vector.broadcast %cst_17 : f32 to vector<2x16xf32>
    %41 = arith.mulf %40, %38 : vector<2x16xf32>
    %42 = arith.mulf %41, %39 : vector<2x16xf32>
    %43 = arith.mulf %42, %39 : vector<2x16xf32>
    %cst_18 = arith.constant 1.500000e+00 : f32
    %44 = vector.broadcast %cst_18 : f32 to vector<2x16xf32>
    %45 = arith.subf %44, %43 : vector<2x16xf32>
    %46 = arith.mulf %39, %45 : vector<2x16xf32>
    %47 = vector.shape_cast %34 : vector<2x32xf32> to vector<2x1x32xf32>
    %48 = vector.broadcast %47 : vector<2x1x32xf32> to vector<2x16x32xf32>
    %49 = arith.mulf %1, %48 : vector<2x16x32xf32>
    %cst_19 = arith.constant dense<0.000000e+00> : vector<2x16xf32>
    %50 = vector.multi_reduction <add>, %49, %cst_19 [2] : vector<2x16x32xf32> to vector<2x16xf32>
    %51 = arith.mulf %50, %46 : vector<2x16xf32>
    %52 = vector.broadcast %19 : vector<2x1xf32> to vector<2x16xf32>
    %53 = arith.mulf %52, %51 : vector<2x16xf32>
    %cst_20 = arith.constant dense<0xFF800000> : vector<2xf32>
    %54 = vector.multi_reduction <maximumf>, %53, %cst_20 [1] : vector<2x16xf32> to vector<2xf32>
    %55 = vector.shape_cast %54 : vector<2xf32> to vector<2x1xf32>
    %56 = vector.broadcast %55 : vector<2x1xf32> to vector<2x16xf32>
    %57 = arith.subf %53, %56 : vector<2x16xf32>
    %58 = math.exp %57 : vector<2x16xf32>
    %cst_21 = arith.constant dense<0.000000e+00> : vector<2xf32>
    %59 = vector.multi_reduction <add>, %58, %cst_21 [1] : vector<2x16xf32> to vector<2xf32>
    %60 = vector.shape_cast %59 : vector<2xf32> to vector<2x1xf32>
    %61 = tpu.reciprocal %60 {approx = true} : vector<2x1xf32> -> vector<2x1xf32>
    %62 = arith.mulf %60, %61 : vector<2x1xf32>
    %cst_22 = arith.constant 2.000000e+00 : f32
    %63 = vector.broadcast %cst_22 : f32 to vector<2x1xf32>
    %64 = arith.subf %63, %62 : vector<2x1xf32>
    %65 = arith.mulf %61, %64 : vector<2x1xf32>
    %66 = vector.broadcast %65 : vector<2x1xf32> to vector<2x16xf32>
    %67 = arith.mulf %58, %66 : vector<2x16xf32>
    %68 = vector.shape_cast %67 : vector<2x16xf32> to vector<2x16x1xf32>
    %69 = vector.broadcast %68 : vector<2x16x1xf32> to vector<2x16x32xf32>
    %70 = arith.mulf %69, %1 : vector<2x16x32xf32>
    %cst_23 = arith.constant dense<0.000000e+00> : vector<2x32xf32>
    %71 = vector.multi_reduction <add>, %70, %cst_23 [1] : vector<2x16x32xf32> to vector<2x32xf32>
    %c0_24 = arith.constant 0 : index
    %c0_25 = arith.constant 0 : index
    %72 = vector.load %arg5[%c0_24, %c0_25] : memref<2x48xf32, #tpu.memory_space<vmem>>, vector<2x32xf32>
    tpu.vector_store %arg5[%c0_24, %c0_25], %71 {strides = array<i32>} : memref<2x48xf32, #tpu.memory_space<vmem>>, vector<2x32xf32>,
    %c0_26 = arith.constant 0 : index
    %c32 = arith.constant 32 : index
    %73 = vector.load %arg5[%c0_26, %c32] : memref<2x48xf32, #tpu.memory_space<vmem>>, vector<2x16xf32>
    tpu.vector_store %arg5[%c0_26, %c32], %67 {strides = array<i32>} : memref<2x48xf32, #tpu.memory_space<vmem>>, vector<2x16xf32>,
    return
  }
  func.func @transform_0(%arg0: i32) -> (i32, i32) {
    %c0_i32 = arith.constant 0 : i32
    %c0_i32_0 = arith.constant 0 : i32
    return %arg0, %c0_i32 : i32, i32
  }
  func.func @transform_1(%arg0: i32) -> (i32, i32, i32) {
    %c0_i32 = arith.constant 0 : i32
    %c0_i32_0 = arith.constant 0 : i32
    %c0_i32_1 = arith.constant 0 : i32
    return %arg0, %c0_i32, %c0_i32_0 : i32, i32, i32
  }
  func.func @transform_2(%arg0: i32) -> (i32, i32) {
    %c0_i32 = arith.constant 0 : i32
    %c0_i32_0 = arith.constant 0 : i32
    %c0_i32_1 = arith.constant 0 : i32
    return %c0_i32, %c0_i32_0 : i32, i32
  }
  func.func @transform_3(%arg0: i32) -> (i32, i32) {
    %c0_i32 = arith.constant 0 : i32
    %c0_i32_0 = arith.constant 0 : i32
    %c0_i32_1 = arith.constant 0 : i32
    return %c0_i32, %c0_i32_0 : i32, i32
  }
  func.func @transform_4(%arg0: i32) -> (i32, i32) {
    %c0_i32 = arith.constant 0 : i32
    %c0_i32_0 = arith.constant 0 : i32
    return %arg0, %c0_i32 : i32, i32
  }
}

</mosaic_0001>

<llo_original>
// kernel: read_head.1
$region0: #{read_head.1}
  #allocation0 [shape = 'u32[]', space=smem, size = 0x4, offset = 0x4, fixed_abs, tag = 'smem constant byte address 0x4 - core index']
  #allocation1 [shape = 'u32[144,128]{1,0:T(1,128)}', space=vmem, size = 0x12000, scoped, tag = 'internal scratch']
  %s0 = inlined_call_operand.vmem [shape: f32[2,32], index: 0, kind: input, shape index: {}]
  %s1 = inlined_call_operand.vmem [shape: f32[2,16,32], index: 1, kind: input, shape index: {}]
  %s2 = inlined_call_operand.vmem [shape: f32[32,33], index: 2, kind: input, shape index: {}]
  %s3 = inlined_call_operand.vmem [shape: f32[1,33], index: 3, kind: input, shape index: {}]
  %s4 = inlined_call_operand.vmem [shape: f32[2,48], index: 4, kind: output, shape index: {}]
  %s5 = sld [smem:[#allocation0]]
  $region26: #{read_head.1} parent=0
    _
  %s7 = ssub.s32 1, %s5
  %s8 = scalar_select 0, %s7, %s5
  // Predicated region
  $region2: #{read_head.1} parent=0 // pred_check
    _
  $region3: #{read_head.1} parent=0 // pred_check_branch
    %10 = sbr.rel (0) target = $region5
  $region4: #{read_head.1} parent=0 // pred_region
    _
  $region5: #{read_head.1} parent=0 // pred_fallthru
    _
  // Predicated region
  $region6: #{read_head.1} parent=0 // pred_check
    _
  $region7: #{read_head.1} parent=0 // pred_check_branch
    %12 = sbr.rel (0) target = $region9
  $region8: #{read_head.1} parent=0 // pred_region
    _
  $region9: #{read_head.1} parent=0 // pred_fallthru
    _
  // Predicated region
  $region10: #{read_head.1} parent=0 // pred_check
    _
  $region11: #{read_head.1} parent=0 // pred_check_branch
    %14 = sbr.rel (0) target = $region13
  $region12: #{read_head.1} parent=0 // pred_region
    _
  $region13: #{read_head.1} parent=0 // pred_fallthru
    _
  // Predicated region
  $region14: #{read_head.1} parent=0 // pred_check
    _
  $region15: #{read_head.1} parent=0 // pred_check_branch
    %16 = sbr.rel (0) target = $region17
  $region16: #{read_head.1} parent=0 // pred_region
    _
  $region17: #{read_head.1} parent=0 // pred_fallthru
    _
  %v17 = vld [vmem:[%s0] sm:$0x3]
  %v18 = vld [vmem:[%s1] sm:$0xff]
  %v19 = vld [vmem:[%s1 + $0x8] sm:$0xff]
  %v20 = vld [vmem:[%s1 + $0x10] sm:$0xff]
  %v21 = vld [vmem:[%s1 + $0x18] sm:$0xff]
  %v22 = vld [vmem:[%s2] sm:$0xff]
  %v23 = vld [vmem:[%s2 + $0x8] sm:$0xff]
  %v24 = vld [vmem:[%s2 + $0x10] sm:$0xff]
  %v25 = vld [vmem:[%s2 + $0x18] sm:$0xff]
  %v26 = vld [vmem:[%s3] sm:$0x1]
  %v28 = vlaneseq
  %v29 = vshrl.u32 %v28, 7
  %v30 = vsub.s32 0, %v29
  %v31 = vrot.slane %v26, %v30
  %vm33 = vcmask 261120
  %v35 = vsel %vm33, %v17, 0
  %37 = vmatprep.subr.mxu0 0.0
  %38 = vmatpush1.msra.mxu0 0.0
  %39 = vmatprep.subr.mxu0 0.0
  %40 = vmatpush1.msra.mxu0 0.0
  %41 = vmatprep.subr.mxu0 0.0
  %42 = vmatpush1.msra.mxu0 0.0
  %43 = vmatprep.subr.mxu0 0.0
  %44 = vmatpush1.msra.mxu0 0.0
  %45 = vmatprep.subr.mxu0 0.0
  %46 = vmatpush1.msra.mxu0 0.0
  %47 = vmatprep.subr.mxu0 0.0
  %48 = vmatpush1.msra.mxu0 0.0
  %49 = vmatprep.subr.mxu0 0.0
  %50 = vmatpush1.msra.mxu0 0.0
  %51 = vmatprep.subr.mxu0 0.0
  %52 = vmatpush1.msra.mxu0 0.0
  %53 = vmatprep.subr.mxu0 0.0
  %54 = vmatpush1.msra.mxu0 0.0
  %55 = vmatprep.subr.mxu0 0.0
  %56 = vmatpush1.msra.mxu0 0.0
  %57 = vmatprep.subr.mxu0 0.0
  %58 = vmatpush1.msra.mxu0 0.0
  %59 = vmatprep.subr.mxu0 0.0
  %60 = vmatpush1.msra.mxu0 0.0
  %61 = vmatprep.subr.mxu0 0.0
  %62 = vmatpush1.msra.mxu0 %v25
  %63 = vmatprep.subr.mxu0 0.0
  %64 = vmatpush1.msra.mxu0 %v24
  %65 = vmatprep.subr.mxu0 0.0
  %66 = vmatpush1.msra.mxu0 %v23
  %67 = vmatprep.subr.mxu0 0.0
  %68 = vmatpush1.msra.mxu0 %v22
  %69 = vmatprep.subr.mxu0 0.0
  %70 = vmatpush2.msra.mxu0 0.0
  %71 = vmatprep.subr.mxu0 0.0
  %72 = vmatpush2.msra.mxu0 0.0
  %73 = vmatprep.subr.mxu0 0.0
  %74 = vmatpush2.msra.mxu0 0.0
  %75 = vmatprep.subr.mxu0 0.0
  %76 = vmatpush2.msra.mxu0 0.0
  %77 = vmatprep.subr.mxu0 0.0
  %78 = vmatpush2.msra.mxu0 0.0
  %79 = vmatprep.subr.mxu0 0.0
  %80 = vmatpush2.msra.mxu0 0.0
  %81 = vmatprep.subr.mxu0 0.0
  %82 = vmatpush2.msra.mxu0 0.0
  %83 = vmatprep.subr.mxu0 0.0
  %84 = vmatpush2.msra.mxu0 0.0
  %85 = vmatprep.subr.mxu0 0.0
  %86 = vmatpush2.msra.mxu0 0.0
  %87 = vmatprep.subr.mxu0 0.0
  %88 = vmatpush2.msra.mxu0 0.0
  %89 = vmatprep.subr.mxu0 0.0
  %90 = vmatpush2.msra.mxu0 0.0
  %91 = vmatprep.subr.mxu0 0.0
  %92 = vmatpush2.msra.mxu0 0.0
  %93 = vmatprep.subr.mxu0 0.0
  %94 = vmatpush2.msra.mxu0 0.0
  %95 = vmatprep.subr.mxu0 0.0
  %96 = vmatpush2.msra.mxu0 0.0
  %97 = vmatprep.subr.mxu0 0.0
  %98 = vmatpush2.msra.mxu0 0.0
  %99 = vmatprep.subr.mxu0 0.0
  %100 = vmatpush2.msra.mxu0 0.0
  %101 = vmatprep.mubr.f32.mxu0 0.0
  %102 = vmatmul.mubr.f32.gmra.mxu0 %v35
  %v103 = vpop.f32.mrf.mxu0
  %v104 = vadd.f32 %v31, %v103
  %v105 = vpop.f32.mrf.mxu0
  %106 = vdwg.mxu0
  %v107 = vtanh.pop %v104
  %v108 = vmax.f32 %v104, 0.0
  %v109 = vand.u32 2147483647, %v104
  %v110 = vsub.f32 0.0, %v109
  %v111 = vmul.f32 %v110, 1.442695
  %v112 = vpow.pop %v111
  %v113 = vadd.f32 %v112, 1.0
  %v114 = vlog2.pop %v113
  %v115 = vmul.f32 %v114, 0.6931472
  %v116 = vmul.f32 -0.5, %v112
  %v117 = vadd.f32 %v116, 1.0
  %v118 = vmul.f32 %v117, %v112
  %v119 = vand.u32 2147483647, %v112
  %vm120 = vcmp.lt.f32.partialorder %v119, 0.0004427343
  %v121 = vsel %vm120, %v118, %v115
  %v122 = vadd.f32 %v108, %v121
  %v123 = vadd.f32 %v122, 1e-05
  %v124 = vmul.f32 %v107, %v107
  %vm125 = vcmask 254976
  %v126 = vsel %vm125, %v124, 0.0
  %127 = vadd.xlane.f32.xlu0 %v126
  %v128 = vpop.xlane.xlu0 %127
  %v129 = vmax.f32 %v128, 1e-24
  %v130 = vrsqrt.pop %v129
  %v131 = vmul.f32 %v129, 0.5
  %v132 = vmul.f32 %v131, %v130
  %v133 = vmul.f32 %v132, %v130
  %v134 = vsub.f32 1.5, %v133
  %v135 = vmul.f32 %v130, %v134
  %v136 = vmul.f32 %v107, %v135
  %v137 = vmul.f32 %v18, %v18
  %v138 = vmul.f32 %v19, %v19
  %v139 = vmul.f32 %v20, %v20
  %v140 = vmul.f32 %v21, %v21
  %v141 = vsel %vm33, %v137, 0.0
  %142 = vadd.xlane.f32.xlu0 %v141
  %v143 = vpop.xlane.xlu0 %142
  %v144 = vsel %vm33, %v138, 0.0
  %145 = vadd.xlane.f32.xlu0 %v144
  %v146 = vpop.xlane.xlu0 %145
  %v147 = vsel %vm33, %v139, 0.0
  %148 = vadd.xlane.f32.xlu0 %v147
  %v149 = vpop.xlane.xlu0 %148
  %v150 = vsel %vm33, %v140, 0.0
  %151 = vadd.xlane.f32.xlu0 %v150
  %v152 = vpop.xlane.xlu0 %151
  %v153 = vmax.f32 %v143, 1e-24
  %v154 = vmax.f32 %v146, 1e-24
  %v155 = vmax.f32 %v149, 1e-24
  %v156 = vmax.f32 %v152, 1e-24
  %v157 = vrsqrt.pop %v153
  %v158 = vrsqrt.pop %v154
  %v159 = vrsqrt.pop %v155
  %v160 = vrsqrt.pop %v156
  %v161 = vmul.f32 %v153, 0.5
  %v162 = vmul.f32 %v154, 0.5
  %v163 = vmul.f32 %v155, 0.5
  %v164 = vmul.f32 %v156, 0.5
  %v165 = vmul.f32 %v161, %v157
  %v166 = vmul.f32 %v162, %v158
  %v167 = vmul.f32 %v163, %v159
  %v168 = vmul.f32 %v164, %v160
  %v169 = vmul.f32 %v165, %v157
  %v170 = vmul.f32 %v166, %v158
  %v171 = vmul.f32 %v167, %v159
  %v172 = vmul.f32 %v168, %v160
  %v173 = vsub.f32 1.5, %v169
  %v174 = vsub.f32 1.5, %v170
  %v175 = vsub.f32 1.5, %v171
  %v176 = vsub.f32 1.5, %v172
  %v177 = vmul.f32 %v157, %v173
  %v178 = vmul.f32 %v158, %v174
  %v179 = vmul.f32 %v159, %v175
  %v180 = vmul.f32 %v160, %v176
  %v183 = vunpack.c.l.s4 1966171168
  %v184 = vunpack.c.0.s8 %v183
  %v185 = vlaneseq
  %v186 = vshrl.u32 %v185, 7
  %v187 = vsub.s32 %v184, %v186
  %v188 = vrot.slane %v136, %v187
  %v189 = vcombine.high %v188, %v188
  %v191 = vunpack.c.l.s4 1966171168
  %v192 = vunpack.c.0.s8 %v191
  %v193 = vlaneseq
  %v194 = vshrl.u32 %v193, 7
  %v195 = vsub.s32 %v192, %v194
  %v196 = vrot.slane %v188, %v195
  %v198 = vunpack.c.l.s4 1966171168
  %v199 = vunpack.c.0.s8 %v198
  %v200 = vlaneseq
  %v201 = vshrl.u32 %v200, 7
  %v202 = vsub.s32 %v199, %v201
  %v203 = vrot.slane %v189, %v202
  %v204 = vlaneseq
  %v205 = vshrl.u32 %v204, 7
  %v206 = vsub.s32 0, %v205
  %v207 = vrot.slane %v196, %v206
  %v208 = vlaneseq
  %v209 = vshrl.u32 %v208, 7
  %v210 = vsub.s32 0, %v209
  %v211 = vrot.slane %v203, %v210
  %v214 = vmul.f32 %v18, %v207
  %v215 = vmul.f32 %v19, %v207
  %v216 = vmul.f32 %v20, %v211
  %v217 = vmul.f32 %v21, %v211
  %v218 = vsel %vm33, %v214, 0.0
  %219 = vadd.xlane.f32.xlu0 %v218
  %v220 = vpop.xlane.xlu0 %219
  %v221 = vsel %vm33, %v215, 0.0
  %222 = vadd.xlane.f32.xlu0 %v221
  %v223 = vpop.xlane.xlu0 %222
  %v224 = vsel %vm33, %v216, 0.0
  %225 = vadd.xlane.f32.xlu0 %v224
  %v226 = vpop.xlane.xlu0 %225
  %v227 = vsel %vm33, %v217, 0.0
  %228 = vadd.xlane.f32.xlu0 %v227
  %v229 = vpop.xlane.xlu0 %228
  %v230 = vmul.f32 %v220, %v177
  %v231 = vmul.f32 %v223, %v178
  %v232 = vmul.f32 %v226, %v179
  %v233 = vmul.f32 %v229, %v180
  %235 = vset.pattern.permute.xlu0 32
  %236 = vperm.xlu0 %235, %v123
  %v237 = vpop.permute.xlu0 %236
  %v243 = vlaneseq
  %v244 = vand.u32 %v243, 127
  %v245 = vlaneseq
  %v246 = vshrl.u32 %v245, 7
  %v247 = vsub.s32 %v244, %v246
  %v248 = vrot.slane %v230, %v247
  %v249 = vadd.s32 %v244, 4294967288
  %v250 = vlaneseq
  %v251 = vshrl.u32 %v250, 7
  %v252 = vsub.s32 %v249, %v251
  %v253 = vrot.slane %v231, %v252
  %vm254 = vcmask 130112
  %v255 = vsel %vm254, %v253, %v248
  %v256 = vlaneseq
  %v257 = vshrl.u32 %v256, 7
  %v258 = vsub.s32 %v244, %v257
  %v259 = vrot.slane %v232, %v258
  %v260 = vlaneseq
  %v261 = vshrl.u32 %v260, 7
  %v262 = vsub.s32 %v249, %v261
  %v263 = vrot.slane %v233, %v262
  %v264 = vsel %vm254, %v263, %v259
  %vm265 = vcmask 1041409
  %v266 = vsel %vm265, %v264, %v255
  %v268 = vmul.f32 %v237, %v266
  %vm269 = vcmask 123904
  %v270 = vsel %vm269, %v268, -inf
  %271 = vmax.xlane.f32.xlu0 %v270
  %v272 = vpop.xlane.xlu0 %271
  %v273 = vsub.f32 %v268, %v272
  %v274 = vmul.f32 %v273, 1.442695
  %v275 = vpow.pop %v274
  %v276 = vsel %vm269, %v275, 0.0
  %277 = vadd.xlane.f32.xlu0 %v276
  %v278 = vpop.xlane.xlu0 %277
  %v279 = vrcp.pop %v278
  %v280 = vmul.f32 %v278, %v279
  %v281 = vsub.f32 2.0, %v280
  %v282 = vmul.f32 %v279, %v281
  %v283 = vmul.f32 %v275, %v282
  %v284 = vlaneseq
  %v285 = vshrl.u32 %v284, 7
  %v286 = vsub.s32 0, %v285
  %v287 = vrot.slane %v283, %v286
  %289 = vbcast.lane.b32.xlu0 %v287, 256
  %v290 = vpop.permute.xlu0 %289
  %s292 = sor.u32 256, 8
  %293 = vbcast.lane.b32.xlu0 %v287, %s292
  %v294 = vpop.permute.xlu0 %293
  %v295 = vlaneseq
  %v296 = vshrl.u32 %v295, 7
  %v297 = vsub.s32 1, %v296
  %v298 = vrot.slane %v283, %v297
  %300 = vbcast.lane.b32.xlu0 %v298, 256
  %v301 = vpop.permute.xlu0 %300
  %s303 = sor.u32 256, 8
  %304 = vbcast.lane.b32.xlu0 %v298, %s303
  %v305 = vpop.permute.xlu0 %304
  %v306 = vmul.f32 %v290, %v18
  %v307 = vmul.f32 %v294, %v19
  %v308 = vmul.f32 %v301, %v20
  %v309 = vmul.f32 %v305, %v21
  %v310 = vsel %vm33, %v306, 0.0
  %v311 = vsel %vm33, %v307, 0.0
  %v312 = vadd.f32 %v310, %v311
  %v313 = vrot.slane %v312, 4
  %v314 = vadd.f32 %v312, %v313
  %v315 = vrot.slane %v314, 2
  %v316 = vadd.f32 %v314, %v315
  %v317 = vrot.slane %v316, 1
  %v318 = vadd.f32 %v316, %v317
  %v319 = vsel %vm33, %v308, 0.0
  %v320 = vsel %vm33, %v309, 0.0
  %v321 = vadd.f32 %v319, %v320
  %v322 = vrot.slane %v321, 4
  %v323 = vadd.f32 %v321, %v322
  %v324 = vrot.slane %v323, 2
  %v325 = vadd.f32 %v323, %v324
  %v326 = vrot.slane %v325, 1
  %v327 = vadd.f32 %v325, %v326
  %v330 = vsel %vm265, %v327, %v318
  %332 = vst.msk [vmem:[%s4] sm:$0x3] %vm125, %v330
  %334 = vrot.lane.b32.xlu0 %v283, 32
  %v335 = vpop.permute.xlu0 %334
  %vm337 = vcmask 386304
  %338 = vst.msk [vmem:[%s4] sm:$0x3] %vm337, %v335
  // Predicated region
  $region18: #{read_head.1} parent=0 // pred_check
    _
  $region19: #{read_head.1} parent=0 // pred_check_branch
    %340 = sbr.rel (0) target = $region21
  $region20: #{read_head.1} parent=0 // pred_region
    _
  $region21: #{read_head.1} parent=0 // pred_fallthru
    _
  // Predicated region
  $region22: #{read_head.1} parent=0 // pred_check
    _
  $region23: #{read_head.1} parent=0 // pred_check_branch
    %342 = sbr.rel (0) target = $region25
  $region24: #{read_head.1} parent=0 // pred_region
    _
  $region25: #{read_head.1} parent=0 // pred_fallthru
    _

</llo_original>
